<compile_context>
chip_gen: v6e
topology: v6e:2x2x1
jax: 0.10.0
libtpu: 0.0.40
codegen_flags: <defaults>
</compile_context>

<pallas_src>
import jax
import jax.numpy as jnp
from jax.experimental import pallas as pl
from jax.experimental.pallas import tpu as pltpu

_LANE = 128
_MAX_TM = 1024             # v6e: ~85%+ of HBM roofline by 512-1024-row tiles
_MIN_SPLIT_ROWS = 512      # above this, force an even number of grid steps (v7x)
_SCRATCH_MARGIN = 1 << 20  # Mosaic internal scratch headroom


def _round_up(x, m):
    return (x + m - 1) // m * m


def _cdiv(a, b):
    return (a + b - 1) // b


def _row_align(dtype):
    """Minimum second-minor (row) tile multiple for a streamed dtype."""
    size = jnp.dtype(dtype).itemsize
    if size >= 4:
        return 8
    if size == 2:
        return 16
    return 32


def _adapter_kernel(x_ref, w1t_ref, w2t_ref, o_ref):
    # x_ref  : (tm, c_in_p)       VMEM tile of input rows
    # w1t_ref: (c_in_p, hid_p)    W1^T, padded, bf16, resident (single buffer)
    # w2t_ref: (hid_p, c_in_p)    W2^T, padded, bf16, resident (single buffer)
    # o_ref  : (tm, c_in_p)       output tile
    x = x_ref[...]
    # bf16 MXU path, f32 accumulation; ReLU on the f32 accumulator (VPU).
    h = jnp.dot(x.astype(w1t_ref.dtype), w1t_ref[...],
                preferred_element_type=jnp.float32)
    h = jnp.maximum(h, 0.0)
    y = jnp.dot(h.astype(w2t_ref.dtype), w2t_ref[...],
                preferred_element_type=jnp.float32)
    y = jnp.maximum(y, 0.0)
    o_ref[...] = y.astype(o_ref.dtype)


def clip_adapter_prepare_params(w1, w2, *, compute_dtype=jnp.bfloat16):
    """One-time weight prep (do at model init, NOT per forward call).

    w1: (hidden, c_in)  -- PyTorch nn.Linear weight layout (out, in)
    w2: (c_in, hidden)
    Returns (w1t_padded, w2t_padded): transposed, zero-padded to multiples of
    128 on both feature dims, cast to `compute_dtype`.  Zero padding is exact:
    padded input columns hit zero weight rows; padded hidden/output columns
    stay zero through ReLU and are sliced off (only when c_in % 128 != 0).
    """
    hidden, c_in = w1.shape
    assert w2.shape == (c_in, hidden)
    c_in_p = _round_up(c_in, _LANE)
    hid_p = _round_up(hidden, _LANE)
    w1t = jnp.zeros((c_in_p, hid_p), compute_dtype)
    w1t = w1t.at[:c_in, :hidden].set(w1.T.astype(compute_dtype))
    w2t = jnp.zeros((hid_p, c_in_p), compute_dtype)
    w2t = w2t.at[:hidden, :c_in].set(w2.T.astype(compute_dtype))
    return w1t, w2t


def _choose_tm(n_rows, c_in_p, hid_p, x_bytes, out_bytes, row_align,
               vmem_budget_bytes):
    """Largest row tile that fits the VMEM budget, then balanced for megacore."""
    # Weights: two bf16 matrices, single-buffered (pl.Buffered(1)).
    w_bytes = 2 * c_in_p * hid_p * 2
    # Per row of a tile:
    #   double-buffered x tile + double-buffered out tile (streaming)
    #   + f32 h / y accumulators
    #   + in-kernel bf16 copies from x.astype(...) and h.astype(...)
    per_row = (2 * c_in_p * x_bytes + 2 * c_in_p * out_bytes
               + hid_p * 4 + c_in_p * 4
               + c_in_p * 2 + hid_p * 2)
    avail = vmem_budget_bytes - w_bytes - _SCRATCH_MARGIN
    avail = max(avail, per_row * row_align)
    tm = min(_MAX_TM, avail // per_row)
    tm = max(row_align, (tm // row_align) * row_align)

    if n_rows < _MIN_SPLIT_ROWS:
        # Small batch: one tile covering all rows if it fits (grid of 1 step).
        if tm >= n_rows:
            return max(row_align, _round_up(n_rows, row_align))
        return tm

    # Medium/large batch: keep an even number of grid steps (>=2) so both
    # v7x TensorCores get balanced work and the DMA pipeline has overlap.
    n_steps = max(2, _cdiv(n_rows, tm))
    if n_steps % 2:
        n_steps += 1
    tm = min(tm, max(row_align, _round_up(_cdiv(n_rows, n_steps), row_align)))
    return tm


def clip_adapter_forward(x, w1t, w2t, c_in, *, out_dtype=None, tm=None,
                         vmem_budget_bytes=24 * 1024 * 1024):
    """x: (..., c_in); w1t / w2t from clip_adapter_prepare_params.

    out_dtype defaults to x.dtype; pass bf16 end-to-end (x and out_dtype both
    bf16) when the surrounding model runs in bf16 to halve HBM traffic.
    """
    orig_shape = x.shape
    assert orig_shape[-1] == c_in
    c_in_p, hid_p = w1t.shape
    assert w2t.shape == (hid_p, c_in_p)
    if out_dtype is None:
        out_dtype = x.dtype

    x2 = x.reshape(-1, c_in)
    n = x2.shape[0]
    x_bytes = jnp.dtype(x.dtype).itemsize
    out_bytes = jnp.dtype(out_dtype).itemsize
    row_align = max(_row_align(x.dtype), _row_align(out_dtype))

    if tm is None:
        tm = _choose_tm(n, c_in_p, hid_p, x_bytes, out_bytes, row_align,
                        vmem_budget_bytes)

    # Column padding only when c_in is not a 128 multiple (not the typical
    # CLIP case). Rows are NOT padded: the grid uses cdiv and Pallas masks
    # the partial last block.
    if c_in_p != c_in:
        x2 = jnp.pad(x2, ((0, 0), (0, c_in_p - c_in)))

    grid = (pl.cdiv(n, tm),)

    out = pl.pallas_call(
        _adapter_kernel,
        out_shape=jax.ShapeDtypeStruct((n, c_in_p), out_dtype),
        grid_spec=pltpu.PrefetchScalarGridSpec(
            num_scalar_prefetch=0,
            grid=grid,
            in_specs=[
                # Streaming x rows (double-buffered by default).
                pl.BlockSpec((tm, c_in_p), lambda i: (i, 0)),
                # Constant-index weights: single buffer is enough.
                pl.BlockSpec((c_in_p, hid_p), lambda i: (0, 0),
                             pipeline_mode=pl.Buffered(1)),
                pl.BlockSpec((hid_p, c_in_p), lambda i: (0, 0),
                             pipeline_mode=pl.Buffered(1)),
            ],
            out_specs=pl.BlockSpec((tm, c_in_p), lambda i: (i, 0)),
        ),
        compiler_params=pltpu.CompilerParams(
            dimension_semantics=("parallel",),
            # Align Mosaic's scoped VMEM limit with the budget used to size
            # tm (v5e's default scoped limit is only 16 MiB); well under
            # v7x's 64 MiB physical VMEM per TensorCore.
            vmem_limit_bytes=vmem_budget_bytes),
    )(x2, w1t, w2t)

    if c_in_p != c_in:
        out = out[:, :c_in]
    return out.reshape(orig_shape)


def clip_adapter_reference(x, w1, w2):
    h = jnp.maximum(x @ w1.T, 0.0)
    return jnp.maximum(h @ w2.T, 0.0)


if __name__ == "__main__":
    key = jax.random.PRNGKey(0)
    k_x, k_w1, k_w2 = jax.random.split(key, 3)

    # Small shapes consistent with the module: x is (batch, c_in).
    N, c_in, reduction = 16, 64, 4
    hidden = c_in // reduction

    x = jax.random.normal(k_x, (N, c_in), dtype=jnp.float32)
    # nn.Linear weight shape = (out_features, in_features).
    w1 = jax.random.normal(k_w1, (hidden, c_in), dtype=jnp.float32) * 0.1
    w2 = jax.random.normal(k_w2, (c_in, hidden), dtype=jnp.float32) * 0.1

    # One-time weight prep (transpose + pad + bf16), hoisted out of the
    # per-call path.
    w1t, w2t = clip_adapter_prepare_params(w1, w2)

    out = clip_adapter_forward(x, w1t, w2t, c_in)
    out = jax.block_until_ready(out)

    ref = clip_adapter_reference(x, w1, w2)
    assert out.shape == (N, c_in)
    # bf16 matmuls with f32 accumulation vs full-f32 reference: loose tol.
    assert jnp.allclose(out, ref, atol=3e-2, rtol=3e-2), "mismatch vs reference"

    print("KERNEL_OK")
</pallas_src>

<mosaic_0001>
module attributes {stable_mosaic.version = 11 : i64} {
  func.func @_adapter_kernel(%arg0: i32, %arg1: memref<16x128xf32, #tpu.memory_space<vmem>>, %arg2: memref<128x128xbf16, #tpu.memory_space<vmem>>, %arg3: memref<128x128xbf16, #tpu.memory_space<vmem>>, %arg4: memref<16x128xf32, #tpu.memory_space<vmem>>) attributes {dimension_semantics = [#tpu.dimension_semantics<parallel>], iteration_bounds = array<i64: 1>, scalar_prefetch = 0 : i64, scratch_operands = 0 : i64, tpu.core_type = #tpu.core_type<tc>, window_params = [{transform_indices = @transform_0, window_bounds = array<i64: 16, 128>}, {pipeline_mode = #tpu.pipeline_mode<synchronous>, transform_indices = @transform_1, window_bounds = array<i64: 128, 128>}, {pipeline_mode = #tpu.pipeline_mode<synchronous>, transform_indices = @transform_2, window_bounds = array<i64: 128, 128>}, {transform_indices = @transform_3, window_bounds = array<i64: 16, 128>}]} {
    %c0 = arith.constant 0 : index
    %c0_0 = arith.constant 0 : index
    %0 = vector.load %arg1[%c0, %c0_0] : memref<16x128xf32, #tpu.memory_space<vmem>>, vector<16x128xf32>
    %1 = arith.truncf %0 : vector<16x128xf32> to vector<16x128xbf16>
    %c0_1 = arith.constant 0 : index
    %c0_2 = arith.constant 0 : index
    %2 = vector.load %arg2[%c0_1, %c0_2] : memref<128x128xbf16, #tpu.memory_space<vmem>>, vector<128x128xbf16>
    %cst = arith.constant dense<0.000000e+00> : vector<16x128xf32>
    %3 = tpu.matmul %1, %2, %cst {dimension_numbers = #tpu.dot_dimension_numbers<[1], [0], [0], [1], [0, 0, 1, 1], [], []>} : vector<16x128xbf16>, vector<128x128xbf16>, vector<16x128xf32> -> vector<16x128xf32>
    %cst_3 = arith.constant 0.000000e+00 : f32
    %4 = vector.broadcast %cst_3 : f32 to vector<16x128xf32>
    %5 = arith.maximumf %3, %4 : vector<16x128xf32>
    %6 = arith.truncf %5 : vector<16x128xf32> to vector<16x128xbf16>
    %c0_4 = arith.constant 0 : index
    %c0_5 = arith.constant 0 : index
    %7 = vector.load %arg3[%c0_4, %c0_5] : memref<128x128xbf16, #tpu.memory_space<vmem>>, vector<128x128xbf16>
    %cst_6 = arith.constant dense<0.000000e+00> : vector<16x128xf32>
    %8 = tpu.matmul %6, %7, %cst_6 {dimension_numbers = #tpu.dot_dimension_numbers<[1], [0], [0], [1], [0, 0, 1, 1], [], []>} : vector<16x128xbf16>, vector<128x128xbf16>, vector<16x128xf32> -> vector<16x128xf32>
    %cst_7 = arith.constant 0.000000e+00 : f32
    %9 = vector.broadcast %cst_7 : f32 to vector<16x128xf32>
    %10 = arith.maximumf %8, %9 : vector<16x128xf32>
    %c0_8 = arith.constant 0 : index
    %c0_9 = arith.constant 0 : index
    %11 = vector.load %arg4[%c0_8, %c0_9] : memref<16x128xf32, #tpu.memory_space<vmem>>, vector<16x128xf32>
    tpu.vector_store %arg4[%c0_8, %c0_9], %10 {strides = array<i32>} : memref<16x128xf32, #tpu.memory_space<vmem>>, vector<16x128xf32>,
    return
  }
  func.func @transform_0(%arg0: i32) -> (i32, i32) {
    %c0_i32 = arith.constant 0 : i32
    %c0_i32_0 = arith.constant 0 : i32
    return %arg0, %c0_i32 : i32, i32
  }
  func.func @transform_1(%arg0: i32) -> (i32, i32) {
    %c0_i32 = arith.constant 0 : i32
    %c0_i32_0 = arith.constant 0 : i32
    %c0_i32_1 = arith.constant 0 : i32
    return %c0_i32, %c0_i32_0 : i32, i32
  }
  func.func @transform_2(%arg0: i32) -> (i32, i32) {
    %c0_i32 = arith.constant 0 : i32
    %c0_i32_0 = arith.constant 0 : i32
    %c0_i32_1 = arith.constant 0 : i32
    return %c0_i32, %c0_i32_0 : i32, i32
  }
  func.func @transform_3(%arg0: i32) -> (i32, i32) {
    %c0_i32 = arith.constant 0 : i32
    %c0_i32_0 = arith.constant 0 : i32
    return %arg0, %c0_i32 : i32, i32
  }
}

</mosaic_0001>

<llo_original>
// kernel: tpu_custom_call.1
$region0: #{tpu_custom_call.1}
  #allocation0 [shape = 'u32[]', space=smem, size = 0x4, offset = 0x4, fixed_abs, tag = 'smem constant byte address 0x4 - core index']
  #allocation1 [shape = 'u32[144,128]{1,0:T(1,128)}', space=vmem, size = 0x12000, scoped, tag = 'internal scratch']
  %s0 = inlined_call_operand.hbm [shape: f32[16,128], index: 0, kind: input, shape index: {}]
  %s1 = inlined_call_operand.hbm [shape: bf16[128,128], index: 1, kind: input, shape index: {}]
  %s2 = inlined_call_operand.hbm [shape: bf16[128,128], index: 2, kind: input, shape index: {}]
  %s3 = inlined_call_operand.hbm [shape: f32[16,128], index: 3, kind: output, shape index: {}]
  %s4 = sld [smem:[#allocation0]]
  $region34: #{tpu_custom_call.1} parent=0
    _
  %s6 = ssub.s32 1, %s4
  %s7 = scalar_select 0, %s6, %s4
  $region1: #{tpu_custom_call.1} parent=0
    #allocation2 [shape = 'u8[8192]{0}', space=vmem, size = 0x2000, scoped, tag = 'input window, operand 0, single buffered']
    #allocation3 [shape = 's32[1]{0}', space=sflag, size = 0x4, scoped, tag = 'scoped memory for tpu_custom_call.1']
    #allocation4 [shape = 's32[1]{0}', space=sflag, size = 0x4, scoped, tag = 'scoped memory for tpu_custom_call.1']
    #allocation5 [shape = 'u8[32768]{0}', space=vmem, size = 0x8000, scoped, tag = 'input window, operand 1, single buffered']
    #allocation6 [shape = 's32[1]{0}', space=sflag, size = 0x4, scoped, tag = 'scoped memory for tpu_custom_call.1']
    #allocation7 [shape = 'u8[32768]{0}', space=vmem, size = 0x8000, scoped, tag = 'input window, operand 2, single buffered']
    #allocation8 [shape = 'u8[8192]{0}', space=vmem, size = 0x2000, scoped, tag = 'output window, operand 0, single buffered']
    %8 = vsyncpa [#allocation3], 0
    %9 = vsyncpa [#allocation6], 0
    %10 = vsyncpa [#allocation4], 0
    // Predicated region
    $region2: #{tpu_custom_call.1} parent=1 // pred_check
      _
    $region3: #{tpu_custom_call.1} parent=1 // pred_check_branch
      %12 = sbr.rel (0) target = $region5
    $region4: #{tpu_custom_call.1} parent=1 // pred_region
      %s14 = ssub.s32 256, 256
      %15 = vsyncadd [#allocation3], %s14
      %s16 = sshll.u32 [#allocation2], 4
      %s17 = int_to_ptr.vmem [resolvable:$true] %s16
      %22 = dma.hbm_to_vmem [thread:$0]  %s0, 256, %s17, [#allocation3], 128, 128, 8
    $region5: #{tpu_custom_call.1} parent=1 // pred_fallthru
      _
    // Predicated region
    $region6: #{tpu_custom_call.1} parent=1 // pred_check
      _
    $region7: #{tpu_custom_call.1} parent=1 // pred_check_branch
      %24 = sbr.rel (0) target = $region9
    $region8: #{tpu_custom_call.1} parent=1 // pred_region
      %s26 = ssub.s32 1024, 1024
      %27 = vsyncadd [#allocation6], %s26
      %s28 = sshll.u32 [#allocation5], 4
      %s29 = int_to_ptr.vmem [resolvable:$true] %s28
      %34 = dma.hbm_to_vmem [thread:$0]  %s1, 1024, %s29, [#allocation6], 64, 64, 4
    $region9: #{tpu_custom_call.1} parent=1 // pred_fallthru
      _
    // Predicated region
    $region10: #{tpu_custom_call.1} parent=1 // pred_check
      _
    $region11: #{tpu_custom_call.1} parent=1 // pred_check_branch
      %36 = sbr.rel (0) target = $region13
    $region12: #{tpu_custom_call.1} parent=1 // pred_region
      %s38 = ssub.s32 1024, 1024
      %39 = vsyncadd [#allocation6], %s38
      %s40 = sshll.u32 [#allocation7], 4
      %s41 = int_to_ptr.vmem [resolvable:$true] %s40
      %46 = dma.hbm_to_vmem [thread:$0]  %s2, 1024, %s41, [#allocation6], 64, 64, 4
    $region13: #{tpu_custom_call.1} parent=1 // pred_fallthru
      _
    // Predicated region
    $region14: #{tpu_custom_call.1} parent=1 // pred_check
      _
    $region15: #{tpu_custom_call.1} parent=1 // pred_check_branch
      %48 = sbr.rel (0) target = $region17
    $region16: #{tpu_custom_call.1} parent=1 // pred_region
      %49 = dma.done [#allocation3], 256
    $region17: #{tpu_custom_call.1} parent=1 // pred_fallthru
      _
    // Predicated region
    $region18: #{tpu_custom_call.1} parent=1 // pred_check
      _
    $region19: #{tpu_custom_call.1} parent=1 // pred_check_branch
      %51 = sbr.rel (0) target = $region21
    $region20: #{tpu_custom_call.1} parent=1 // pred_region
      %52 = dma.done [#allocation6], 1024
    $region21: #{tpu_custom_call.1} parent=1 // pred_fallthru
      _
    // Predicated region
    $region22: #{tpu_custom_call.1} parent=1 // pred_check
      _
    $region23: #{tpu_custom_call.1} parent=1 // pred_check_branch
      %54 = sbr.rel (0) target = $region25
    $region24: #{tpu_custom_call.1} parent=1 // pred_region
      %55 = dma.done [#allocation6], 1024
    $region25: #{tpu_custom_call.1} parent=1 // pred_fallthru
      _
    %v57 = vld [vmem:[#allocation2] sm:$0xff]
    %v58 = vld [vmem:[#allocation2 + $0x8] sm:$0xff]
    %v59 = vpack.c.bf16 %v58, %v57
    %v60 = vld [vmem:[#allocation5] sm:$0xf]
    %v61 = vld [vmem:[#allocation5 + $0x4] sm:$0xf]
    %v62 = vld [vmem:[#allocation5 + $0x8] sm:$0xf]
    %v63 = vld [vmem:[#allocation5 + $0xc] sm:$0xf]
    %v64 = vld [vmem:[#allocation5 + $0x10] sm:$0xf]
    %v65 = vld [vmem:[#allocation5 + $0x14] sm:$0xf]
    %v66 = vld [vmem:[#allocation5 + $0x18] sm:$0xf]
    %v67 = vld [vmem:[#allocation5 + $0x1c] sm:$0xf]
    %v68 = vld [vmem:[#allocation5 + $0x20] sm:$0xf]
    %v69 = vld [vmem:[#allocation5 + $0x24] sm:$0xf]
    %v70 = vld [vmem:[#allocation5 + $0x28] sm:$0xf]
    %v71 = vld [vmem:[#allocation5 + $0x2c] sm:$0xf]
    %v72 = vld [vmem:[#allocation5 + $0x30] sm:$0xf]
    %v73 = vld [vmem:[#allocation5 + $0x34] sm:$0xf]
    %v74 = vld [vmem:[#allocation5 + $0x38] sm:$0xf]
    %v75 = vld [vmem:[#allocation5 + $0x3c] sm:$0xf]
    %v92 = vunpack.c.l.b16 %v60
    %v93 = vunpack.c.l.b16 %v61
    %v94 = vunpack.c.l.b16 %v62
    %v95 = vunpack.c.l.b16 %v63
    %v96 = vunpack.c.l.b16 %v64
    %v97 = vunpack.c.l.b16 %v65
    %v98 = vunpack.c.l.b16 %v66
    %v99 = vunpack.c.l.b16 %v67
    %v100 = vunpack.c.l.b16 %v68
    %v101 = vunpack.c.l.b16 %v69
    %v102 = vunpack.c.l.b16 %v70
    %v103 = vunpack.c.l.b16 %v71
    %v104 = vunpack.c.l.b16 %v72
    %v105 = vunpack.c.l.b16 %v73
    %v106 = vunpack.c.l.b16 %v74
    %v107 = vunpack.c.l.b16 %v75
    %v108 = vpack.c.b16 %v93, %v92
    %v109 = vpack.c.b16 %v95, %v94
    %v110 = vpack.c.b16 %v97, %v96
    %v111 = vpack.c.b16 %v99, %v98
    %v112 = vpack.c.b16 %v101, %v100
    %v113 = vpack.c.b16 %v103, %v102
    %v114 = vpack.c.b16 %v105, %v104
    %v115 = vpack.c.b16 %v107, %v106
    %124 = vmatprep.subr.bf16.mxu0 0
    %125 = vmatpush1.bf16.msra.mxu0 %v115
    %126 = vmatprep.subr.bf16.mxu0 0
    %127 = vmatpush1.bf16.msra.mxu0 %v114
    %128 = vmatprep.subr.bf16.mxu0 0
    %129 = vmatpush1.bf16.msra.mxu0 %v113
    %130 = vmatprep.subr.bf16.mxu0 0
    %131 = vmatpush1.bf16.msra.mxu0 %v112
    %132 = vmatprep.subr.bf16.mxu0 0
    %133 = vmatpush1.bf16.msra.mxu0 %v111
    %134 = vmatprep.subr.bf16.mxu0 0
    %135 = vmatpush1.bf16.msra.mxu0 %v110
    %136 = vmatprep.subr.bf16.mxu0 0
    %137 = vmatpush1.bf16.msra.mxu0 %v109
    %138 = vmatprep.subr.bf16.mxu0 0
    %139 = vmatpush1.bf16.msra.mxu0 %v108
    %140 = vmatprep.subr.bf16.mxu0 0
    %141 = vmatpush2.bf16.msra.mxu0 0
    %142 = vmatprep.subr.bf16.mxu0 0
    %143 = vmatpush2.bf16.msra.mxu0 0
    %144 = vmatprep.subr.bf16.mxu0 0
    %145 = vmatpush2.bf16.msra.mxu0 0
    %146 = vmatprep.subr.bf16.mxu0 0
    %147 = vmatpush2.bf16.msra.mxu0 0
    %148 = vmatprep.subr.bf16.mxu0 0
    %149 = vmatpush2.bf16.msra.mxu0 0
    %150 = vmatprep.subr.bf16.mxu0 0
    %151 = vmatpush2.bf16.msra.mxu0 0
    %152 = vmatprep.subr.bf16.mxu0 0
    %153 = vmatpush2.bf16.msra.mxu0 0
    %154 = vmatprep.subr.bf16.mxu0 0
    %155 = vmatpush2.bf16.msra.mxu0 0
    %156 = vmatprep.mubr.bf16.mxu0 0
    %157 = vmatmul.mubr.bf16.gmra.mxu0 %v59
    %v158 = vpop.f32.mrf.mxu0
    %v159 = vadd.f32 0.0, %v158
    %v160 = vpop.f32.mrf.mxu0
    %v161 = vpop.f32.mrf.mxu0
    %v162 = vadd.f32 0.0, %v161
    %v163 = vpop.f32.mrf.mxu0
    %164 = vdwg.mxu0
    %v165 = vmax.f32 %v159, 0.0
    %v166 = vmax.f32 %v162, 0.0
    %v167 = vpack.c.bf16 %v166, %v165
    %v168 = vld [vmem:[#allocation7] sm:$0xf]
    %v169 = vld [vmem:[#allocation7 + $0x4] sm:$0xf]
    %v170 = vld [vmem:[#allocation7 + $0x8] sm:$0xf]
    %v171 = vld [vmem:[#allocation7 + $0xc] sm:$0xf]
    %v172 = vld [vmem:[#allocation7 + $0x10] sm:$0xf]
    %v173 = vld [vmem:[#allocation7 + $0x14] sm:$0xf]
    %v174 = vld [vmem:[#allocation7 + $0x18] sm:$0xf]
    %v175 = vld [vmem:[#allocation7 + $0x1c] sm:$0xf]
    %v176 = vld [vmem:[#allocation7 + $0x20] sm:$0xf]
    %v177 = vld [vmem:[#allocation7 + $0x24] sm:$0xf]
    %v178 = vld [vmem:[#allocation7 + $0x28] sm:$0xf]
    %v179 = vld [vmem:[#allocation7 + $0x2c] sm:$0xf]
    %v180 = vld [vmem:[#allocation7 + $0x30] sm:$0xf]
    %v181 = vld [vmem:[#allocation7 + $0x34] sm:$0xf]
    %v182 = vld [vmem:[#allocation7 + $0x38] sm:$0xf]
    %v183 = vld [vmem:[#allocation7 + $0x3c] sm:$0xf]
    %v200 = vunpack.c.l.b16 %v168
    %v201 = vunpack.c.l.b16 %v169
    %v202 = vunpack.c.l.b16 %v170
    %v203 = vunpack.c.l.b16 %v171
    %v204 = vunpack.c.l.b16 %v172
    %v205 = vunpack.c.l.b16 %v173
    %v206 = vunpack.c.l.b16 %v174
    %v207 = vunpack.c.l.b16 %v175
    %v208 = vunpack.c.l.b16 %v176
    %v209 = vunpack.c.l.b16 %v177
    %v210 = vunpack.c.l.b16 %v178
    %v211 = vunpack.c.l.b16 %v179
    %v212 = vunpack.c.l.b16 %v180
    %v213 = vunpack.c.l.b16 %v181
    %v214 = vunpack.c.l.b16 %v182
    %v215 = vunpack.c.l.b16 %v183
    %v216 = vpack.c.b16 %v201, %v200
    %v217 = vpack.c.b16 %v203, %v202
    %v218 = vpack.c.b16 %v205, %v204
    %v219 = vpack.c.b16 %v207, %v206
    %v220 = vpack.c.b16 %v209, %v208
    %v221 = vpack.c.b16 %v211, %v210
    %v222 = vpack.c.b16 %v213, %v212
    %v223 = vpack.c.b16 %v215, %v214
    %232 = vmatprep.subr.bf16.mxu0 0
    %233 = vmatpush1.bf16.msra.mxu0 %v223
    %234 = vmatprep.subr.bf16.mxu0 0
    %235 = vmatpush1.bf16.msra.mxu0 %v222
    %236 = vmatprep.subr.bf16.mxu0 0
    %237 = vmatpush1.bf16.msra.mxu0 %v221
    %238 = vmatprep.subr.bf16.mxu0 0
    %239 = vmatpush1.bf16.msra.mxu0 %v220
    %240 = vmatprep.subr.bf16.mxu0 0
    %241 = vmatpush1.bf16.msra.mxu0 %v219
    %242 = vmatprep.subr.bf16.mxu0 0
    %243 = vmatpush1.bf16.msra.mxu0 %v218
    %244 = vmatprep.subr.bf16.mxu0 0
    %245 = vmatpush1.bf16.msra.mxu0 %v217
    %246 = vmatprep.subr.bf16.mxu0 0
    %247 = vmatpush1.bf16.msra.mxu0 %v216
    %248 = vmatprep.subr.bf16.mxu0 0
    %249 = vmatpush2.bf16.msra.mxu0 0
    %250 = vmatprep.subr.bf16.mxu0 0
    %251 = vmatpush2.bf16.msra.mxu0 0
    %252 = vmatprep.subr.bf16.mxu0 0
    %253 = vmatpush2.bf16.msra.mxu0 0
    %254 = vmatprep.subr.bf16.mxu0 0
    %255 = vmatpush2.bf16.msra.mxu0 0
    %256 = vmatprep.subr.bf16.mxu0 0
    %257 = vmatpush2.bf16.msra.mxu0 0
    %258 = vmatprep.subr.bf16.mxu0 0
    %259 = vmatpush2.bf16.msra.mxu0 0
    %260 = vmatprep.subr.bf16.mxu0 0
    %261 = vmatpush2.bf16.msra.mxu0 0
    %262 = vmatprep.subr.bf16.mxu0 0
    %263 = vmatpush2.bf16.msra.mxu0 0
    %264 = vmatprep.mubr.bf16.mxu0 0
    %265 = vmatmul.mubr.bf16.gmra.mxu0 %v167
    %v266 = vpop.f32.mrf.mxu0
    %v267 = vadd.f32 0.0, %v266
    %v268 = vpop.f32.mrf.mxu0
    %v269 = vpop.f32.mrf.mxu0
    %v270 = vadd.f32 0.0, %v269
    %v271 = vpop.f32.mrf.mxu0
    %272 = vdwg.mxu0
    %v273 = vmax.f32 %v267, 0.0
    %v274 = vmax.f32 %v270, 0.0
    %275 = vst [vmem:[#allocation8] sm:$0xff] %v273
    %276 = vst [vmem:[#allocation8 + $0x8] sm:$0xff] %v274
    // Predicated region
    $region26: #{tpu_custom_call.1} parent=1 // pred_check
      _
    $region27: #{tpu_custom_call.1} parent=1 // pred_check_branch
      %278 = sbr.rel (0) target = $region29
    $region28: #{tpu_custom_call.1} parent=1 // pred_region
      %s280 = ssub.s32 256, 256
      %281 = vsyncadd [#allocation4], %s280
      %s282 = sshll.u32 [#allocation8], 4
      %s283 = int_to_ptr.vmem [resolvable:$true] %s282
      %288 = dma.vmem_to_hbm [thread:$0]  %s283, 256, %s3, [#allocation4], 128, 128, 8
    $region29: #{tpu_custom_call.1} parent=1 // pred_fallthru
      _
    // Predicated region
    $region30: #{tpu_custom_call.1} parent=1 // pred_check
      _
    $region31: #{tpu_custom_call.1} parent=1 // pred_check_branch
      %290 = sbr.rel (0) target = $region33
    $region32: #{tpu_custom_call.1} parent=1 // pred_region
      %291 = dma.done [#allocation4], 256
    $region33: #{tpu_custom_call.1} parent=1 // pred_fallthru
      _
    %292 = vsyncpa [#allocation3], 1
    %293 = vsyncpa [#allocation6], 1
    %294 = vsyncpa [#allocation4], 1

</llo_original>
